<compile_context>
chip_gen: v7x
topology: tpu7x:2x2x1
jax: 0.10.0
libtpu: 0.0.40
codegen_flags: <defaults>
</compile_context>

<pallas_src>
import jax
import jax.numpy as jnp
from jax.experimental import pallas as pl
from jax.experimental.pallas import tpu as pltpu

NEG_SLOPE = 0.01          # PyTorch nn.LeakyReLU() default negative_slope
LANES = 128               # lane width: batch is folded into lanes
DEFAULT_TILE_ROWS = 256   # rows per grid step -> 256*128 = 32768 samples/tile

# Real layer sizes of the Discriminator.
LAYER_DIMS = [(1, 10), (10, 7), (7, 3), (3, 1)]

# Offsets of each layer's weights / biases inside the flat SMEM param array.
W1_OFF, B1_OFF = 0, 10          # w1: (1,10)  -> 10   b1: 10
W2_OFF, B2_OFF = 20, 90         # w2: (10,7)  -> 70   b2: 7
W3_OFF, B3_OFF = 97, 118        # w3: (7,3)   -> 21   b3: 3
W4_OFF, B4_OFF = 121, 124       # w4: (3,1)   -> 3    b4: 1
N_PARAMS = 125


def _leaky(v):
    return jnp.where(v > 0, v, NEG_SLOPE * v)


def discriminator_kernel(params_ref, x_ref, o_ref):
    """VPU-only fused MLP on one (TILE_R, 128) slab of samples.

    params_ref : SMEM f32[125]  -- all weights/biases as scalars
    x_ref      : VMEM f32[TILE_R, 128] -- batch folded into (sublane, lane)
    o_ref      : VMEM f32[TILE_R, 128]
    """
    x = x_ref[...]

    # Layer 1: 1 -> 10   (h1[j] = leaky(x * w1[j] + b1[j]))
    h1 = [_leaky(x * params_ref[W1_OFF + j] + params_ref[B1_OFF + j])
          for j in range(10)]

    # Layer 2: 10 -> 7
    h2 = []
    for k in range(7):
        s = h1[0] * params_ref[W2_OFF + 0 * 7 + k]
        for j in range(1, 10):
            s = s + h1[j] * params_ref[W2_OFF + j * 7 + k]
        h2.append(_leaky(s + params_ref[B2_OFF + k]))

    # Layer 3: 7 -> 3
    h3 = []
    for m in range(3):
        s = h2[0] * params_ref[W3_OFF + 0 * 3 + m]
        for k in range(1, 7):
            s = s + h2[k] * params_ref[W3_OFF + k * 3 + m]
        h3.append(_leaky(s + params_ref[B3_OFF + m]))

    # Layer 4: 3 -> 1
    s = h3[0] * params_ref[W4_OFF + 0]
    s = s + h3[1] * params_ref[W4_OFF + 1]
    s = s + h3[2] * params_ref[W4_OFF + 2]
    out = _leaky(s + params_ref[B4_OFF])

    o_ref[...] = out.astype(o_ref.dtype)


def _flatten_params(params):
    parts = []
    for (w, b) in params:
        parts.append(w.reshape(-1))
        parts.append(b.reshape(-1))
    flat = jnp.concatenate(parts).astype(jnp.float32)
    assert flat.shape == (N_PARAMS,), flat.shape
    return flat


def discriminator_forward(x, params, *, tile_rows=DEFAULT_TILE_ROWS):
    """x: (batch, 1) float -> (batch, 1) float32."""
    assert x.ndim == 2 and x.shape[-1] == 1, x.shape
    batch = x.shape[0]

    # Fold the batch into a lane-dense (rows, 128) slab.
    xf = x.reshape(-1).astype(jnp.float32)
    n = xf.shape[0]
    rows = max(-(-n // LANES), 1)           # ceil(n / 128)
    rows8 = -(-rows // 8) * 8               # sublane multiple
    tr = min(tile_rows, rows8)              # tile rows (multiple of 8)
    tr = max(-(-tr // 8) * 8, 8)
    rows_padded = -(-rows8 // tr) * tr      # whole number of tiles
    total = rows_padded * LANES

    x2 = jnp.pad(xf, (0, total - n)).reshape(rows_padded, LANES)
    flat_params = _flatten_params(params)

    grid = (rows_padded // tr,)
    out = pl.pallas_call(
        discriminator_kernel,
        out_shape=jax.ShapeDtypeStruct((rows_padded, LANES), jnp.float32),
        grid=grid,
        in_specs=[
            pl.BlockSpec(memory_space=pltpu.MemorySpace.SMEM),    # params
            pl.BlockSpec((tr, LANES), lambda i: (i, 0)),          # x slab
        ],
        out_specs=pl.BlockSpec((tr, LANES), lambda i: (i, 0)),
        compiler_params=pltpu.CompilerParams(
            dimension_semantics=("parallel",)),                   # 2 TCs on v7x
    )(flat_params, x2)

    return out.reshape(-1)[:n].reshape(batch, 1)


def init_params(key):
    """Deterministic PyTorch-style init: U(-1/sqrt(fan_in), 1/sqrt(fan_in))."""
    params = []
    for (fan_in, fan_out) in LAYER_DIMS:
        key, kw, kb = jax.random.split(key, 3)
        bound = 1.0 / (fan_in ** 0.5)
        w = jax.random.uniform(kw, (fan_in, fan_out), jnp.float32,
                               minval=-bound, maxval=bound)
        b = jax.random.uniform(kb, (fan_out,), jnp.float32,
                               minval=-bound, maxval=bound)
        params.append((w, b))
    return params


def reference_forward(x, params):
    h = x.astype(jnp.float32)
    for (w, b) in params:
        h = h @ w + b
        h = jnp.where(h > 0, h, NEG_SLOPE * h)
    return h


if __name__ == "__main__":
    key = jax.random.PRNGKey(0)
    k_in, k_in2, k_par = jax.random.split(key, 3)
    params = init_params(k_par)

    # Small single-tile case.
    batch = 4
    x = jax.random.normal(k_in, (batch, 1), jnp.float32)
    out = jax.block_until_ready(discriminator_forward(x, params))
    ref = reference_forward(x, params)
    assert out.shape == (batch, 1), out.shape
    assert jnp.allclose(out, ref, atol=1e-5, rtol=1e-5), (out, ref)

    # Small multi-tile case (tiny tile_rows to exercise the batch grid).
    batch2 = 2050
    x2 = jax.random.normal(k_in2, (batch2, 1), jnp.float32)
    out2 = jax.block_until_ready(discriminator_forward(x2, params, tile_rows=8))
    ref2 = reference_forward(x2, params)
    assert out2.shape == (batch2, 1), out2.shape
    assert jnp.allclose(out2, ref2, atol=1e-5, rtol=1e-5)

    print("KERNEL_OK")
</pallas_src>

<mosaic_0001>
module attributes {stable_mosaic.version = 11 : i64} {
  func.func @discriminator_kernel(%arg0: i32, %arg1: memref<125xf32, #tpu.memory_space<smem>>, %arg2: memref<8x128xf32, #tpu.memory_space<vmem>>, %arg3: memref<8x128xf32, #tpu.memory_space<vmem>>) attributes {dimension_semantics = [#tpu.dimension_semantics<parallel>], iteration_bounds = array<i64: 1>, scalar_prefetch = 0 : i64, scratch_operands = 0 : i64, tpu.core_type = #tpu.core_type<tc>, window_params = [{transform_indices = @transform_0, window_bounds = array<i64: 125>}, {transform_indices = @transform_1, window_bounds = array<i64: 8, 128>}, {transform_indices = @transform_2, window_bounds = array<i64: 8, 128>}]} {
    %c0 = arith.constant 0 : index
    %c0_0 = arith.constant 0 : index
    %0 = vector.load %arg2[%c0, %c0_0] : memref<8x128xf32, #tpu.memory_space<vmem>>, vector<8x128xf32>
    %c0_1 = arith.constant 0 : index
    %1 = memref.load %arg1[%c0_1] : memref<125xf32, #tpu.memory_space<smem>>
    %2 = vector.broadcast %1 : f32 to vector<8x128xf32>
    %3 = arith.mulf %0, %2 : vector<8x128xf32>
    %c10 = arith.constant 10 : index
    %4 = memref.load %arg1[%c10] : memref<125xf32, #tpu.memory_space<smem>>
    %5 = vector.broadcast %4 : f32 to vector<8x128xf32>
    %6 = arith.addf %3, %5 : vector<8x128xf32>
    %cst = arith.constant 0.000000e+00 : f32
    %7 = vector.broadcast %cst : f32 to vector<8x128xf32>
    %8 = arith.cmpf ogt, %6, %7 : vector<8x128xf32>
    %cst_2 = arith.constant 0.00999999977 : f32
    %9 = vector.broadcast %cst_2 : f32 to vector<8x128xf32>
    %10 = arith.mulf %9, %6 : vector<8x128xf32>
    %11 = arith.select %8, %6, %10 : vector<8x128xi1>, vector<8x128xf32>
    %c1 = arith.constant 1 : index
    %12 = memref.load %arg1[%c1] : memref<125xf32, #tpu.memory_space<smem>>
    %13 = vector.broadcast %12 : f32 to vector<8x128xf32>
    %14 = arith.mulf %0, %13 : vector<8x128xf32>
    %c11 = arith.constant 11 : index
    %15 = memref.load %arg1[%c11] : memref<125xf32, #tpu.memory_space<smem>>
    %16 = vector.broadcast %15 : f32 to vector<8x128xf32>
    %17 = arith.addf %14, %16 : vector<8x128xf32>
    %cst_3 = arith.constant 0.000000e+00 : f32
    %18 = vector.broadcast %cst_3 : f32 to vector<8x128xf32>
    %19 = arith.cmpf ogt, %17, %18 : vector<8x128xf32>
    %cst_4 = arith.constant 0.00999999977 : f32
    %20 = vector.broadcast %cst_4 : f32 to vector<8x128xf32>
    %21 = arith.mulf %20, %17 : vector<8x128xf32>
    %22 = arith.select %19, %17, %21 : vector<8x128xi1>, vector<8x128xf32>
    %c2 = arith.constant 2 : index
    %23 = memref.load %arg1[%c2] : memref<125xf32, #tpu.memory_space<smem>>
    %24 = vector.broadcast %23 : f32 to vector<8x128xf32>
    %25 = arith.mulf %0, %24 : vector<8x128xf32>
    %c12 = arith.constant 12 : index
    %26 = memref.load %arg1[%c12] : memref<125xf32, #tpu.memory_space<smem>>
    %27 = vector.broadcast %26 : f32 to vector<8x128xf32>
    %28 = arith.addf %25, %27 : vector<8x128xf32>
    %cst_5 = arith.constant 0.000000e+00 : f32
    %29 = vector.broadcast %cst_5 : f32 to vector<8x128xf32>
    %30 = arith.cmpf ogt, %28, %29 : vector<8x128xf32>
    %cst_6 = arith.constant 0.00999999977 : f32
    %31 = vector.broadcast %cst_6 : f32 to vector<8x128xf32>
    %32 = arith.mulf %31, %28 : vector<8x128xf32>
    %33 = arith.select %30, %28, %32 : vector<8x128xi1>, vector<8x128xf32>
    %c3 = arith.constant 3 : index
    %34 = memref.load %arg1[%c3] : memref<125xf32, #tpu.memory_space<smem>>
    %35 = vector.broadcast %34 : f32 to vector<8x128xf32>
    %36 = arith.mulf %0, %35 : vector<8x128xf32>
    %c13 = arith.constant 13 : index
    %37 = memref.load %arg1[%c13] : memref<125xf32, #tpu.memory_space<smem>>
    %38 = vector.broadcast %37 : f32 to vector<8x128xf32>
    %39 = arith.addf %36, %38 : vector<8x128xf32>
    %cst_7 = arith.constant 0.000000e+00 : f32
    %40 = vector.broadcast %cst_7 : f32 to vector<8x128xf32>
    %41 = arith.cmpf ogt, %39, %40 : vector<8x128xf32>
    %cst_8 = arith.constant 0.00999999977 : f32
    %42 = vector.broadcast %cst_8 : f32 to vector<8x128xf32>
    %43 = arith.mulf %42, %39 : vector<8x128xf32>
    %44 = arith.select %41, %39, %43 : vector<8x128xi1>, vector<8x128xf32>
    %c4 = arith.constant 4 : index
    %45 = memref.load %arg1[%c4] : memref<125xf32, #tpu.memory_space<smem>>
    %46 = vector.broadcast %45 : f32 to vector<8x128xf32>
    %47 = arith.mulf %0, %46 : vector<8x128xf32>
    %c14 = arith.constant 14 : index
    %48 = memref.load %arg1[%c14] : memref<125xf32, #tpu.memory_space<smem>>
    %49 = vector.broadcast %48 : f32 to vector<8x128xf32>
    %50 = arith.addf %47, %49 : vector<8x128xf32>
    %cst_9 = arith.constant 0.000000e+00 : f32
    %51 = vector.broadcast %cst_9 : f32 to vector<8x128xf32>
    %52 = arith.cmpf ogt, %50, %51 : vector<8x128xf32>
    %cst_10 = arith.constant 0.00999999977 : f32
    %53 = vector.broadcast %cst_10 : f32 to vector<8x128xf32>
    %54 = arith.mulf %53, %50 : vector<8x128xf32>
    %55 = arith.select %52, %50, %54 : vector<8x128xi1>, vector<8x128xf32>
    %c5 = arith.constant 5 : index
    %56 = memref.load %arg1[%c5] : memref<125xf32, #tpu.memory_space<smem>>
    %57 = vector.broadcast %56 : f32 to vector<8x128xf32>
    %58 = arith.mulf %0, %57 : vector<8x128xf32>
    %c15 = arith.constant 15 : index
    %59 = memref.load %arg1[%c15] : memref<125xf32, #tpu.memory_space<smem>>
    %60 = vector.broadcast %59 : f32 to vector<8x128xf32>
    %61 = arith.addf %58, %60 : vector<8x128xf32>
    %cst_11 = arith.constant 0.000000e+00 : f32
    %62 = vector.broadcast %cst_11 : f32 to vector<8x128xf32>
    %63 = arith.cmpf ogt, %61, %62 : vector<8x128xf32>
    %cst_12 = arith.constant 0.00999999977 : f32
    %64 = vector.broadcast %cst_12 : f32 to vector<8x128xf32>
    %65 = arith.mulf %64, %61 : vector<8x128xf32>
    %66 = arith.select %63, %61, %65 : vector<8x128xi1>, vector<8x128xf32>
    %c6 = arith.constant 6 : index
    %67 = memref.load %arg1[%c6] : memref<125xf32, #tpu.memory_space<smem>>
    %68 = vector.broadcast %67 : f32 to vector<8x128xf32>
    %69 = arith.mulf %0, %68 : vector<8x128xf32>
    %c16 = arith.constant 16 : index
    %70 = memref.load %arg1[%c16] : memref<125xf32, #tpu.memory_space<smem>>
    %71 = vector.broadcast %70 : f32 to vector<8x128xf32>
    %72 = arith.addf %69, %71 : vector<8x128xf32>
    %cst_13 = arith.constant 0.000000e+00 : f32
    %73 = vector.broadcast %cst_13 : f32 to vector<8x128xf32>
    %74 = arith.cmpf ogt, %72, %73 : vector<8x128xf32>
    %cst_14 = arith.constant 0.00999999977 : f32
    %75 = vector.broadcast %cst_14 : f32 to vector<8x128xf32>
    %76 = arith.mulf %75, %72 : vector<8x128xf32>
    %77 = arith.select %74, %72, %76 : vector<8x128xi1>, vector<8x128xf32>
    %c7 = arith.constant 7 : index
    %78 = memref.load %arg1[%c7] : memref<125xf32, #tpu.memory_space<smem>>
    %79 = vector.broadcast %78 : f32 to vector<8x128xf32>
    %80 = arith.mulf %0, %79 : vector<8x128xf32>
    %c17 = arith.constant 17 : index
    %81 = memref.load %arg1[%c17] : memref<125xf32, #tpu.memory_space<smem>>
    %82 = vector.broadcast %81 : f32 to vector<8x128xf32>
    %83 = arith.addf %80, %82 : vector<8x128xf32>
    %cst_15 = arith.constant 0.000000e+00 : f32
    %84 = vector.broadcast %cst_15 : f32 to vector<8x128xf32>
    %85 = arith.cmpf ogt, %83, %84 : vector<8x128xf32>
    %cst_16 = arith.constant 0.00999999977 : f32
    %86 = vector.broadcast %cst_16 : f32 to vector<8x128xf32>
    %87 = arith.mulf %86, %83 : vector<8x128xf32>
    %88 = arith.select %85, %83, %87 : vector<8x128xi1>, vector<8x128xf32>
    %c8 = arith.constant 8 : index
    %89 = memref.load %arg1[%c8] : memref<125xf32, #tpu.memory_space<smem>>
    %90 = vector.broadcast %89 : f32 to vector<8x128xf32>
    %91 = arith.mulf %0, %90 : vector<8x128xf32>
    %c18 = arith.constant 18 : index
    %92 = memref.load %arg1[%c18] : memref<125xf32, #tpu.memory_space<smem>>
    %93 = vector.broadcast %92 : f32 to vector<8x128xf32>
    %94 = arith.addf %91, %93 : vector<8x128xf32>
    %cst_17 = arith.constant 0.000000e+00 : f32
    %95 = vector.broadcast %cst_17 : f32 to vector<8x128xf32>
    %96 = arith.cmpf ogt, %94, %95 : vector<8x128xf32>
    %cst_18 = arith.constant 0.00999999977 : f32
    %97 = vector.broadcast %cst_18 : f32 to vector<8x128xf32>
    %98 = arith.mulf %97, %94 : vector<8x128xf32>
    %99 = arith.select %96, %94, %98 : vector<8x128xi1>, vector<8x128xf32>
    %c9 = arith.constant 9 : index
    %100 = memref.load %arg1[%c9] : memref<125xf32, #tpu.memory_space<smem>>
    %101 = vector.broadcast %100 : f32 to vector<8x128xf32>
    %102 = arith.mulf %0, %101 : vector<8x128xf32>
    %c19 = arith.constant 19 : index
    %103 = memref.load %arg1[%c19] : memref<125xf32, #tpu.memory_space<smem>>
    %104 = vector.broadcast %103 : f32 to vector<8x128xf32>
    %105 = arith.addf %102, %104 : vector<8x128xf32>
    %cst_19 = arith.constant 0.000000e+00 : f32
    %106 = vector.broadcast %cst_19 : f32 to vector<8x128xf32>
    %107 = arith.cmpf ogt, %105, %106 : vector<8x128xf32>
    %cst_20 = arith.constant 0.00999999977 : f32
    %108 = vector.broadcast %cst_20 : f32 to vector<8x128xf32>
    %109 = arith.mulf %108, %105 : vector<8x128xf32>
    %110 = arith.select %107, %105, %109 : vector<8x128xi1>, vector<8x128xf32>
    %c20 = arith.constant 20 : index
    %111 = memref.load %arg1[%c20] : memref<125xf32, #tpu.memory_space<smem>>
    %112 = vector.broadcast %111 : f32 to vector<8x128xf32>
    %113 = arith.mulf %11, %112 : vector<8x128xf32>
    %c27 = arith.constant 27 : index
    %114 = memref.load %arg1[%c27] : memref<125xf32, #tpu.memory_space<smem>>
    %115 = vector.broadcast %114 : f32 to vector<8x128xf32>
    %116 = arith.mulf %22, %115 : vector<8x128xf32>
    %117 = arith.addf %113, %116 : vector<8x128xf32>
    %c34 = arith.constant 34 : index
    %118 = memref.load %arg1[%c34] : memref<125xf32, #tpu.memory_space<smem>>
    %119 = vector.broadcast %118 : f32 to vector<8x128xf32>
    %120 = arith.mulf %33, %119 : vector<8x128xf32>
    %121 = arith.addf %117, %120 : vector<8x128xf32>
    %c41 = arith.constant 41 : index
    %122 = memref.load %arg1[%c41] : memref<125xf32, #tpu.memory_space<smem>>
    %123 = vector.broadcast %122 : f32 to vector<8x128xf32>
    %124 = arith.mulf %44, %123 : vector<8x128xf32>
    %125 = arith.addf %121, %124 : vector<8x128xf32>
    %c48 = arith.constant 48 : index
    %126 = memref.load %arg1[%c48] : memref<125xf32, #tpu.memory_space<smem>>
    %127 = vector.broadcast %126 : f32 to vector<8x128xf32>
    %128 = arith.mulf %55, %127 : vector<8x128xf32>
    %129 = arith.addf %125, %128 : vector<8x128xf32>
    %c55 = arith.constant 55 : index
    %130 = memref.load %arg1[%c55] : memref<125xf32, #tpu.memory_space<smem>>
    %131 = vector.broadcast %130 : f32 to vector<8x128xf32>
    %132 = arith.mulf %66, %131 : vector<8x128xf32>
    %133 = arith.addf %129, %132 : vector<8x128xf32>
    %c62 = arith.constant 62 : index
    %134 = memref.load %arg1[%c62] : memref<125xf32, #tpu.memory_space<smem>>
    %135 = vector.broadcast %134 : f32 to vector<8x128xf32>
    %136 = arith.mulf %77, %135 : vector<8x128xf32>
    %137 = arith.addf %133, %136 : vector<8x128xf32>
    %c69 = arith.constant 69 : index
    %138 = memref.load %arg1[%c69] : memref<125xf32, #tpu.memory_space<smem>>
    %139 = vector.broadcast %138 : f32 to vector<8x128xf32>
    %140 = arith.mulf %88, %139 : vector<8x128xf32>
    %141 = arith.addf %137, %140 : vector<8x128xf32>
    %c76 = arith.constant 76 : index
    %142 = memref.load %arg1[%c76] : memref<125xf32, #tpu.memory_space<smem>>
    %143 = vector.broadcast %142 : f32 to vector<8x128xf32>
    %144 = arith.mulf %99, %143 : vector<8x128xf32>
    %145 = arith.addf %141, %144 : vector<8x128xf32>
    %c83 = arith.constant 83 : index
    %146 = memref.load %arg1[%c83] : memref<125xf32, #tpu.memory_space<smem>>
    %147 = vector.broadcast %146 : f32 to vector<8x128xf32>
    %148 = arith.mulf %110, %147 : vector<8x128xf32>
    %149 = arith.addf %145, %148 : vector<8x128xf32>
    %c90 = arith.constant 90 : index
    %150 = memref.load %arg1[%c90] : memref<125xf32, #tpu.memory_space<smem>>
    %151 = vector.broadcast %150 : f32 to vector<8x128xf32>
    %152 = arith.addf %149, %151 : vector<8x128xf32>
    %cst_21 = arith.constant 0.000000e+00 : f32
    %153 = vector.broadcast %cst_21 : f32 to vector<8x128xf32>
    %154 = arith.cmpf ogt, %152, %153 : vector<8x128xf32>
    %cst_22 = arith.constant 0.00999999977 : f32
    %155 = vector.broadcast %cst_22 : f32 to vector<8x128xf32>
    %156 = arith.mulf %155, %152 : vector<8x128xf32>
    %157 = arith.select %154, %152, %156 : vector<8x128xi1>, vector<8x128xf32>
    %c21 = arith.constant 21 : index
    %158 = memref.load %arg1[%c21] : memref<125xf32, #tpu.memory_space<smem>>
    %159 = vector.broadcast %158 : f32 to vector<8x128xf32>
    %160 = arith.mulf %11, %159 : vector<8x128xf32>
    %c28 = arith.constant 28 : index
    %161 = memref.load %arg1[%c28] : memref<125xf32, #tpu.memory_space<smem>>
    %162 = vector.broadcast %161 : f32 to vector<8x128xf32>
    %163 = arith.mulf %22, %162 : vector<8x128xf32>
    %164 = arith.addf %160, %163 : vector<8x128xf32>
    %c35 = arith.constant 35 : index
    %165 = memref.load %arg1[%c35] : memref<125xf32, #tpu.memory_space<smem>>
    %166 = vector.broadcast %165 : f32 to vector<8x128xf32>
    %167 = arith.mulf %33, %166 : vector<8x128xf32>
    %168 = arith.addf %164, %167 : vector<8x128xf32>
    %c42 = arith.constant 42 : index
    %169 = memref.load %arg1[%c42] : memref<125xf32, #tpu.memory_space<smem>>
    %170 = vector.broadcast %169 : f32 to vector<8x128xf32>
    %171 = arith.mulf %44, %170 : vector<8x128xf32>
    %172 = arith.addf %168, %171 : vector<8x128xf32>
    %c49 = arith.constant 49 : index
    %173 = memref.load %arg1[%c49] : memref<125xf32, #tpu.memory_space<smem>>
    %174 = vector.broadcast %173 : f32 to vector<8x128xf32>
    %175 = arith.mulf %55, %174 : vector<8x128xf32>
    %176 = arith.addf %172, %175 : vector<8x128xf32>
    %c56 = arith.constant 56 : index
    %177 = memref.load %arg1[%c56] : memref<125xf32, #tpu.memory_space<smem>>
    %178 = vector.broadcast %177 : f32 to vector<8x128xf32>
    %179 = arith.mulf %66, %178 : vector<8x128xf32>
    %180 = arith.addf %176, %179 : vector<8x128xf32>
    %c63 = arith.constant 63 : index
    %181 = memref.load %arg1[%c63] : memref<125xf32, #tpu.memory_space<smem>>
    %182 = vector.broadcast %181 : f32 to vector<8x128xf32>
    %183 = arith.mulf %77, %182 : vector<8x128xf32>
    %184 = arith.addf %180, %183 : vector<8x128xf32>
    %c70 = arith.constant 70 : index
    %185 = memref.load %arg1[%c70] : memref<125xf32, #tpu.memory_space<smem>>
    %186 = vector.broadcast %185 : f32 to vector<8x128xf32>
    %187 = arith.mulf %88, %186 : vector<8x128xf32>
    %188 = arith.addf %184, %187 : vector<8x128xf32>
    %c77 = arith.constant 77 : index
    %189 = memref.load %arg1[%c77] : memref<125xf32, #tpu.memory_space<smem>>
    %190 = vector.broadcast %189 : f32 to vector<8x128xf32>
    %191 = arith.mulf %99, %190 : vector<8x128xf32>
    %192 = arith.addf %188, %191 : vector<8x128xf32>
    %c84 = arith.constant 84 : index
    %193 = memref.load %arg1[%c84] : memref<125xf32, #tpu.memory_space<smem>>
    %194 = vector.broadcast %193 : f32 to vector<8x128xf32>
    %195 = arith.mulf %110, %194 : vector<8x128xf32>
    %196 = arith.addf %192, %195 : vector<8x128xf32>
    %c91 = arith.constant 91 : index
    %197 = memref.load %arg1[%c91] : memref<125xf32, #tpu.memory_space<smem>>
    %198 = vector.broadcast %197 : f32 to vector<8x128xf32>
    %199 = arith.addf %196, %198 : vector<8x128xf32>
    %cst_23 = arith.constant 0.000000e+00 : f32
    %200 = vector.broadcast %cst_23 : f32 to vector<8x128xf32>
    %201 = arith.cmpf ogt, %199, %200 : vector<8x128xf32>
    %cst_24 = arith.constant 0.00999999977 : f32
    %202 = vector.broadcast %cst_24 : f32 to vector<8x128xf32>
    %203 = arith.mulf %202, %199 : vector<8x128xf32>
    %204 = arith.select %201, %199, %203 : vector<8x128xi1>, vector<8x128xf32>
    %c22 = arith.constant 22 : index
    %205 = memref.load %arg1[%c22] : memref<125xf32, #tpu.memory_space<smem>>
    %206 = vector.broadcast %205 : f32 to vector<8x128xf32>
    %207 = arith.mulf %11, %206 : vector<8x128xf32>
    %c29 = arith.constant 29 : index
    %208 = memref.load %arg1[%c29] : memref<125xf32, #tpu.memory_space<smem>>
    %209 = vector.broadcast %208 : f32 to vector<8x128xf32>
    %210 = arith.mulf %22, %209 : vector<8x128xf32>
    %211 = arith.addf %207, %210 : vector<8x128xf32>
    %c36 = arith.constant 36 : index
    %212 = memref.load %arg1[%c36] : memref<125xf32, #tpu.memory_space<smem>>
    %213 = vector.broadcast %212 : f32 to vector<8x128xf32>
    %214 = arith.mulf %33, %213 : vector<8x128xf32>
    %215 = arith.addf %211, %214 : vector<8x128xf32>
    %c43 = arith.constant 43 : index
    %216 = memref.load %arg1[%c43] : memref<125xf32, #tpu.memory_space<smem>>
    %217 = vector.broadcast %216 : f32 to vector<8x128xf32>
    %218 = arith.mulf %44, %217 : vector<8x128xf32>
    %219 = arith.addf %215, %218 : vector<8x128xf32>
    %c50 = arith.constant 50 : index
    %220 = memref.load %arg1[%c50] : memref<125xf32, #tpu.memory_space<smem>>
    %221 = vector.broadcast %220 : f32 to vector<8x128xf32>
    %222 = arith.mulf %55, %221 : vector<8x128xf32>
    %223 = arith.addf %219, %222 : vector<8x128xf32>
    %c57 = arith.constant 57 : index
    %224 = memref.load %arg1[%c57] : memref<125xf32, #tpu.memory_space<smem>>
    %225 = vector.broadcast %224 : f32 to vector<8x128xf32>
    %226 = arith.mulf %66, %225 : vector<8x128xf32>
    %227 = arith.addf %223, %226 : vector<8x128xf32>
    %c64 = arith.constant 64 : index
    %228 = memref.load %arg1[%c64] : memref<125xf32, #tpu.memory_space<smem>>
    %229 = vector.broadcast %228 : f32 to vector<8x128xf32>
    %230 = arith.mulf %77, %229 : vector<8x128xf32>
    %231 = arith.addf %227, %230 : vector<8x128xf32>
    %c71 = arith.constant 71 : index
    %232 = memref.load %arg1[%c71] : memref<125xf32, #tpu.memory_space<smem>>
    %233 = vector.broadcast %232 : f32 to vector<8x128xf32>
    %234 = arith.mulf %88, %233 : vector<8x128xf32>
    %235 = arith.addf %231, %234 : vector<8x128xf32>
    %c78 = arith.constant 78 : index
    %236 = memref.load %arg1[%c78] : memref<125xf32, #tpu.memory_space<smem>>
    %237 = vector.broadcast %236 : f32 to vector<8x128xf32>
    %238 = arith.mulf %99, %237 : vector<8x128xf32>
    %239 = arith.addf %235, %238 : vector<8x128xf32>
    %c85 = arith.constant 85 : index
    %240 = memref.load %arg1[%c85] : memref<125xf32, #tpu.memory_space<smem>>
    %241 = vector.broadcast %240 : f32 to vector<8x128xf32>
    %242 = arith.mulf %110, %241 : vector<8x128xf32>
    %243 = arith.addf %239, %242 : vector<8x128xf32>
    %c92 = arith.constant 92 : index
    %244 = memref.load %arg1[%c92] : memref<125xf32, #tpu.memory_space<smem>>
    %245 = vector.broadcast %244 : f32 to vector<8x128xf32>
    %246 = arith.addf %243, %245 : vector<8x128xf32>
    %cst_25 = arith.constant 0.000000e+00 : f32
    %247 = vector.broadcast %cst_25 : f32 to vector<8x128xf32>
    %248 = arith.cmpf ogt, %246, %247 : vector<8x128xf32>
    %cst_26 = arith.constant 0.00999999977 : f32
    %249 = vector.broadcast %cst_26 : f32 to vector<8x128xf32>
    %250 = arith.mulf %249, %246 : vector<8x128xf32>
    %251 = arith.select %248, %246, %250 : vector<8x128xi1>, vector<8x128xf32>
    %c23 = arith.constant 23 : index
    %252 = memref.load %arg1[%c23] : memref<125xf32, #tpu.memory_space<smem>>
    %253 = vector.broadcast %252 : f32 to vector<8x128xf32>
    %254 = arith.mulf %11, %253 : vector<8x128xf32>
    %c30 = arith.constant 30 : index
    %255 = memref.load %arg1[%c30] : memref<125xf32, #tpu.memory_space<smem>>
    %256 = vector.broadcast %255 : f32 to vector<8x128xf32>
    %257 = arith.mulf %22, %256 : vector<8x128xf32>
    %258 = arith.addf %254, %257 : vector<8x128xf32>
    %c37 = arith.constant 37 : index
    %259 = memref.load %arg1[%c37] : memref<125xf32, #tpu.memory_space<smem>>
    %260 = vector.broadcast %259 : f32 to vector<8x128xf32>
    %261 = arith.mulf %33, %260 : vector<8x128xf32>
    %262 = arith.addf %258, %261 : vector<8x128xf32>
    %c44 = arith.constant 44 : index
    %263 = memref.load %arg1[%c44] : memref<125xf32, #tpu.memory_space<smem>>
    %264 = vector.broadcast %263 : f32 to vector<8x128xf32>
    %265 = arith.mulf %44, %264 : vector<8x128xf32>
    %266 = arith.addf %262, %265 : vector<8x128xf32>
    %c51 = arith.constant 51 : index
    %267 = memref.load %arg1[%c51] : memref<125xf32, #tpu.memory_space<smem>>
    %268 = vector.broadcast %267 : f32 to vector<8x128xf32>
    %269 = arith.mulf %55, %268 : vector<8x128xf32>
    %270 = arith.addf %266, %269 : vector<8x128xf32>
    %c58 = arith.constant 58 : index
    %271 = memref.load %arg1[%c58] : memref<125xf32, #tpu.memory_space<smem>>
    %272 = vector.broadcast %271 : f32 to vector<8x128xf32>
    %273 = arith.mulf %66, %272 : vector<8x128xf32>
    %274 = arith.addf %270, %273 : vector<8x128xf32>
    %c65 = arith.constant 65 : index
    %275 = memref.load %arg1[%c65] : memref<125xf32, #tpu.memory_space<smem>>
    %276 = vector.broadcast %275 : f32 to vector<8x128xf32>
    %277 = arith.mulf %77, %276 : vector<8x128xf32>
    %278 = arith.addf %274, %277 : vector<8x128xf32>
    %c72 = arith.constant 72 : index
    %279 = memref.load %arg1[%c72] : memref<125xf32, #tpu.memory_space<smem>>
    %280 = vector.broadcast %279 : f32 to vector<8x128xf32>
    %281 = arith.mulf %88, %280 : vector<8x128xf32>
    %282 = arith.addf %278, %281 : vector<8x128xf32>
    %c79 = arith.constant 79 : index
    %283 = memref.load %arg1[%c79] : memref<125xf32, #tpu.memory_space<smem>>
    %284 = vector.broadcast %283 : f32 to vector<8x128xf32>
    %285 = arith.mulf %99, %284 : vector<8x128xf32>
    %286 = arith.addf %282, %285 : vector<8x128xf32>
    %c86 = arith.constant 86 : index
    %287 = memref.load %arg1[%c86] : memref<125xf32, #tpu.memory_space<smem>>
    %288 = vector.broadcast %287 : f32 to vector<8x128xf32>
    %289 = arith.mulf %110, %288 : vector<8x128xf32>
    %290 = arith.addf %286, %289 : vector<8x128xf32>
    %c93 = arith.constant 93 : index
    %291 = memref.load %arg1[%c93] : memref<125xf32, #tpu.memory_space<smem>>
    %292 = vector.broadcast %291 : f32 to vector<8x128xf32>
    %293 = arith.addf %290, %292 : vector<8x128xf32>
    %cst_27 = arith.constant 0.000000e+00 : f32
    %294 = vector.broadcast %cst_27 : f32 to vector<8x128xf32>
    %295 = arith.cmpf ogt, %293, %294 : vector<8x128xf32>
    %cst_28 = arith.constant 0.00999999977 : f32
    %296 = vector.broadcast %cst_28 : f32 to vector<8x128xf32>
    %297 = arith.mulf %296, %293 : vector<8x128xf32>
    %298 = arith.select %295, %293, %297 : vector<8x128xi1>, vector<8x128xf32>
    %c24 = arith.constant 24 : index
    %299 = memref.load %arg1[%c24] : memref<125xf32, #tpu.memory_space<smem>>
    %300 = vector.broadcast %299 : f32 to vector<8x128xf32>
    %301 = arith.mulf %11, %300 : vector<8x128xf32>
    %c31 = arith.constant 31 : index
    %302 = memref.load %arg1[%c31] : memref<125xf32, #tpu.memory_space<smem>>
    %303 = vector.broadcast %302 : f32 to vector<8x128xf32>
    %304 = arith.mulf %22, %303 : vector<8x128xf32>
    %305 = arith.addf %301, %304 : vector<8x128xf32>
    %c38 = arith.constant 38 : index
    %306 = memref.load %arg1[%c38] : memref<125xf32, #tpu.memory_space<smem>>
    %307 = vector.broadcast %306 : f32 to vector<8x128xf32>
    %308 = arith.mulf %33, %307 : vector<8x128xf32>
    %309 = arith.addf %305, %308 : vector<8x128xf32>
    %c45 = arith.constant 45 : index
    %310 = memref.load %arg1[%c45] : memref<125xf32, #tpu.memory_space<smem>>
    %311 = vector.broadcast %310 : f32 to vector<8x128xf32>
    %312 = arith.mulf %44, %311 : vector<8x128xf32>
    %313 = arith.addf %309, %312 : vector<8x128xf32>
    %c52 = arith.constant 52 : index
    %314 = memref.load %arg1[%c52] : memref<125xf32, #tpu.memory_space<smem>>
    %315 = vector.broadcast %314 : f32 to vector<8x128xf32>
    %316 = arith.mulf %55, %315 : vector<8x128xf32>
    %317 = arith.addf %313, %316 : vector<8x128xf32>
    %c59 = arith.constant 59 : index
    %318 = memref.load %arg1[%c59] : memref<125xf32, #tpu.memory_space<smem>>
    %319 = vector.broadcast %318 : f32 to vector<8x128xf32>
    %320 = arith.mulf %66, %319 : vector<8x128xf32>
    %321 = arith.addf %317, %320 : vector<8x128xf32>
    %c66 = arith.constant 66 : index
    %322 = memref.load %arg1[%c66] : memref<125xf32, #tpu.memory_space<smem>>
    %323 = vector.broadcast %322 : f32 to vector<8x128xf32>
    %324 = arith.mulf %77, %323 : vector<8x128xf32>
    %325 = arith.addf %321, %324 : vector<8x128xf32>
    %c73 = arith.constant 73 : index
    %326 = memref.load %arg1[%c73] : memref<125xf32, #tpu.memory_space<smem>>
    %327 = vector.broadcast %326 : f32 to vector<8x128xf32>
    %328 = arith.mulf %88, %327 : vector<8x128xf32>
    %329 = arith.addf %325, %328 : vector<8x128xf32>
    %c80 = arith.constant 80 : index
    %330 = memref.load %arg1[%c80] : memref<125xf32, #tpu.memory_space<smem>>
    %331 = vector.broadcast %330 : f32 to vector<8x128xf32>
    %332 = arith.mulf %99, %331 : vector<8x128xf32>
    %333 = arith.addf %329, %332 : vector<8x128xf32>
    %c87 = arith.constant 87 : index
    %334 = memref.load %arg1[%c87] : memref<125xf32, #tpu.memory_space<smem>>
    %335 = vector.broadcast %334 : f32 to vector<8x128xf32>
    %336 = arith.mulf %110, %335 : vector<8x128xf32>
    %337 = arith.addf %333, %336 : vector<8x128xf32>
    %c94 = arith.constant 94 : index
    %338 = memref.load %arg1[%c94] : memref<125xf32, #tpu.memory_space<smem>>
    %339 = vector.broadcast %338 : f32 to vector<8x128xf32>
    %340 = arith.addf %337, %339 : vector<8x128xf32>
    %cst_29 = arith.constant 0.000000e+00 : f32
    %341 = vector.broadcast %cst_29 : f32 to vector<8x128xf32>
    %342 = arith.cmpf ogt, %340, %341 : vector<8x128xf32>
    %cst_30 = arith.constant 0.00999999977 : f32
    %343 = vector.broadcast %cst_30 : f32 to vector<8x128xf32>
    %344 = arith.mulf %343, %340 : vector<8x128xf32>
    %345 = arith.select %342, %340, %344 : vector<8x128xi1>, vector<8x128xf32>
    %c25 = arith.constant 25 : index
    %346 = memref.load %arg1[%c25] : memref<125xf32, #tpu.memory_space<smem>>
    %347 = vector.broadcast %346 : f32 to vector<8x128xf32>
    %348 = arith.mulf %11, %347 : vector<8x128xf32>
    %c32 = arith.constant 32 : index
    %349 = memref.load %arg1[%c32] : memref<125xf32, #tpu.memory_space<smem>>
    %350 = vector.broadcast %349 : f32 to vector<8x128xf32>
    %351 = arith.mulf %22, %350 : vector<8x128xf32>
    %352 = arith.addf %348, %351 : vector<8x128xf32>
    %c39 = arith.constant 39 : index
    %353 = memref.load %arg1[%c39] : memref<125xf32, #tpu.memory_space<smem>>
    %354 = vector.broadcast %353 : f32 to vector<8x128xf32>
    %355 = arith.mulf %33, %354 : vector<8x128xf32>
    %356 = arith.addf %352, %355 : vector<8x128xf32>
    %c46 = arith.constant 46 : index
    %357 = memref.load %arg1[%c46] : memref<125xf32, #tpu.memory_space<smem>>
    %358 = vector.broadcast %357 : f32 to vector<8x128xf32>
    %359 = arith.mulf %44, %358 : vector<8x128xf32>
    %360 = arith.addf %356, %359 : vector<8x128xf32>
    %c53 = arith.constant 53 : index
    %361 = memref.load %arg1[%c53] : memref<125xf32, #tpu.memory_space<smem>>
    %362 = vector.broadcast %361 : f32 to vector<8x128xf32>
    %363 = arith.mulf %55, %362 : vector<8x128xf32>
    %364 = arith.addf %360, %363 : vector<8x128xf32>
    %c60 = arith.constant 60 : index
    %365 = memref.load %arg1[%c60] : memref<125xf32, #tpu.memory_space<smem>>
    %366 = vector.broadcast %365 : f32 to vector<8x128xf32>
    %367 = arith.mulf %66, %366 : vector<8x128xf32>
    %368 = arith.addf %364, %367 : vector<8x128xf32>
    %c67 = arith.constant 67 : index
    %369 = memref.load %arg1[%c67] : memref<125xf32, #tpu.memory_space<smem>>
    %370 = vector.broadcast %369 : f32 to vector<8x128xf32>
    %371 = arith.mulf %77, %370 : vector<8x128xf32>
    %372 = arith.addf %368, %371 : vector<8x128xf32>
    %c74 = arith.constant 74 : index
    %373 = memref.load %arg1[%c74] : memref<125xf32, #tpu.memory_space<smem>>
    %374 = vector.broadcast %373 : f32 to vector<8x128xf32>
    %375 = arith.mulf %88, %374 : vector<8x128xf32>
    %376 = arith.addf %372, %375 : vector<8x128xf32>
    %c81 = arith.constant 81 : index
    %377 = memref.load %arg1[%c81] : memref<125xf32, #tpu.memory_space<smem>>
    %378 = vector.broadcast %377 : f32 to vector<8x128xf32>
    %379 = arith.mulf %99, %378 : vector<8x128xf32>
    %380 = arith.addf %376, %379 : vector<8x128xf32>
    %c88 = arith.constant 88 : index
    %381 = memref.load %arg1[%c88] : memref<125xf32, #tpu.memory_space<smem>>
    %382 = vector.broadcast %381 : f32 to vector<8x128xf32>
    %383 = arith.mulf %110, %382 : vector<8x128xf32>
    %384 = arith.addf %380, %383 : vector<8x128xf32>
    %c95 = arith.constant 95 : index
    %385 = memref.load %arg1[%c95] : memref<125xf32, #tpu.memory_space<smem>>
    %386 = vector.broadcast %385 : f32 to vector<8x128xf32>
    %387 = arith.addf %384, %386 : vector<8x128xf32>
    %cst_31 = arith.constant 0.000000e+00 : f32
    %388 = vector.broadcast %cst_31 : f32 to vector<8x128xf32>
    %389 = arith.cmpf ogt, %387, %388 : vector<8x128xf32>
    %cst_32 = arith.constant 0.00999999977 : f32
    %390 = vector.broadcast %cst_32 : f32 to vector<8x128xf32>
    %391 = arith.mulf %390, %387 : vector<8x128xf32>
    %392 = arith.select %389, %387, %391 : vector<8x128xi1>, vector<8x128xf32>
    %c26 = arith.constant 26 : index
    %393 = memref.load %arg1[%c26] : memref<125xf32, #tpu.memory_space<smem>>
    %394 = vector.broadcast %393 : f32 to vector<8x128xf32>
    %395 = arith.mulf %11, %394 : vector<8x128xf32>
    %c33 = arith.constant 33 : index
    %396 = memref.load %arg1[%c33] : memref<125xf32, #tpu.memory_space<smem>>
    %397 = vector.broadcast %396 : f32 to vector<8x128xf32>
    %398 = arith.mulf %22, %397 : vector<8x128xf32>
    %399 = arith.addf %395, %398 : vector<8x128xf32>
    %c40 = arith.constant 40 : index
    %400 = memref.load %arg1[%c40] : memref<125xf32, #tpu.memory_space<smem>>
    %401 = vector.broadcast %400 : f32 to vector<8x128xf32>
    %402 = arith.mulf %33, %401 : vector<8x128xf32>
    %403 = arith.addf %399, %402 : vector<8x128xf32>
    %c47 = arith.constant 47 : index
    %404 = memref.load %arg1[%c47] : memref<125xf32, #tpu.memory_space<smem>>
    %405 = vector.broadcast %404 : f32 to vector<8x128xf32>
    %406 = arith.mulf %44, %405 : vector<8x128xf32>
    %407 = arith.addf %403, %406 : vector<8x128xf32>
    %c54 = arith.constant 54 : index
    %408 = memref.load %arg1[%c54] : memref<125xf32, #tpu.memory_space<smem>>
    %409 = vector.broadcast %408 : f32 to vector<8x128xf32>
    %410 = arith.mulf %55, %409 : vector<8x128xf32>
    %411 = arith.addf %407, %410 : vector<8x128xf32>
    %c61 = arith.constant 61 : index
    %412 = memref.load %arg1[%c61] : memref<125xf32, #tpu.memory_space<smem>>
    %413 = vector.broadcast %412 : f32 to vector<8x128xf32>
    %414 = arith.mulf %66, %413 : vector<8x128xf32>
    %415 = arith.addf %411, %414 : vector<8x128xf32>
    %c68 = arith.constant 68 : index
    %416 = memref.load %arg1[%c68] : memref<125xf32, #tpu.memory_space<smem>>
    %417 = vector.broadcast %416 : f32 to vector<8x128xf32>
    %418 = arith.mulf %77, %417 : vector<8x128xf32>
    %419 = arith.addf %415, %418 : vector<8x128xf32>
    %c75 = arith.constant 75 : index
    %420 = memref.load %arg1[%c75] : memref<125xf32, #tpu.memory_space<smem>>
    %421 = vector.broadcast %420 : f32 to vector<8x128xf32>
    %422 = arith.mulf %88, %421 : vector<8x128xf32>
    %423 = arith.addf %419, %422 : vector<8x128xf32>
    %c82 = arith.constant 82 : index
    %424 = memref.load %arg1[%c82] : memref<125xf32, #tpu.memory_space<smem>>
    %425 = vector.broadcast %424 : f32 to vector<8x128xf32>
    %426 = arith.mulf %99, %425 : vector<8x128xf32>
    %427 = arith.addf %423, %426 : vector<8x128xf32>
    %c89 = arith.constant 89 : index
    %428 = memref.load %arg1[%c89] : memref<125xf32, #tpu.memory_space<smem>>
    %429 = vector.broadcast %428 : f32 to vector<8x128xf32>
    %430 = arith.mulf %110, %429 : vector<8x128xf32>
    %431 = arith.addf %427, %430 : vector<8x128xf32>
    %c96 = arith.constant 96 : index
    %432 = memref.load %arg1[%c96] : memref<125xf32, #tpu.memory_space<smem>>
    %433 = vector.broadcast %432 : f32 to vector<8x128xf32>
    %434 = arith.addf %431, %433 : vector<8x128xf32>
    %cst_33 = arith.constant 0.000000e+00 : f32
    %435 = vector.broadcast %cst_33 : f32 to vector<8x128xf32>
    %436 = arith.cmpf ogt, %434, %435 : vector<8x128xf32>
    %cst_34 = arith.constant 0.00999999977 : f32
    %437 = vector.broadcast %cst_34 : f32 to vector<8x128xf32>
    %438 = arith.mulf %437, %434 : vector<8x128xf32>
    %439 = arith.select %436, %434, %438 : vector<8x128xi1>, vector<8x128xf32>
    %c97 = arith.constant 97 : index
    %440 = memref.load %arg1[%c97] : memref<125xf32, #tpu.memory_space<smem>>
    %441 = vector.broadcast %440 : f32 to vector<8x128xf32>
    %442 = arith.mulf %157, %441 : vector<8x128xf32>
    %c100 = arith.constant 100 : index
    %443 = memref.load %arg1[%c100] : memref<125xf32, #tpu.memory_space<smem>>
    %444 = vector.broadcast %443 : f32 to vector<8x128xf32>
    %445 = arith.mulf %204, %444 : vector<8x128xf32>
    %446 = arith.addf %442, %445 : vector<8x128xf32>
    %c103 = arith.constant 103 : index
    %447 = memref.load %arg1[%c103] : memref<125xf32, #tpu.memory_space<smem>>
    %448 = vector.broadcast %447 : f32 to vector<8x128xf32>
    %449 = arith.mulf %251, %448 : vector<8x128xf32>
    %450 = arith.addf %446, %449 : vector<8x128xf32>
    %c106 = arith.constant 106 : index
    %451 = memref.load %arg1[%c106] : memref<125xf32, #tpu.memory_space<smem>>
    %452 = vector.broadcast %451 : f32 to vector<8x128xf32>
    %453 = arith.mulf %298, %452 : vector<8x128xf32>
    %454 = arith.addf %450, %453 : vector<8x128xf32>
    %c109 = arith.constant 109 : index
    %455 = memref.load %arg1[%c109] : memref<125xf32, #tpu.memory_space<smem>>
    %456 = vector.broadcast %455 : f32 to vector<8x128xf32>
    %457 = arith.mulf %345, %456 : vector<8x128xf32>
    %458 = arith.addf %454, %457 : vector<8x128xf32>
    %c112 = arith.constant 112 : index
    %459 = memref.load %arg1[%c112] : memref<125xf32, #tpu.memory_space<smem>>
    %460 = vector.broadcast %459 : f32 to vector<8x128xf32>
    %461 = arith.mulf %392, %460 : vector<8x128xf32>
    %462 = arith.addf %458, %461 : vector<8x128xf32>
    %c115 = arith.constant 115 : index
    %463 = memref.load %arg1[%c115] : memref<125xf32, #tpu.memory_space<smem>>
    %464 = vector.broadcast %463 : f32 to vector<8x128xf32>
    %465 = arith.mulf %439, %464 : vector<8x128xf32>
    %466 = arith.addf %462, %465 : vector<8x128xf32>
    %c118 = arith.constant 118 : index
    %467 = memref.load %arg1[%c118] : memref<125xf32, #tpu.memory_space<smem>>
    %468 = vector.broadcast %467 : f32 to vector<8x128xf32>
    %469 = arith.addf %466, %468 : vector<8x128xf32>
    %cst_35 = arith.constant 0.000000e+00 : f32
    %470 = vector.broadcast %cst_35 : f32 to vector<8x128xf32>
    %471 = arith.cmpf ogt, %469, %470 : vector<8x128xf32>
    %cst_36 = arith.constant 0.00999999977 : f32
    %472 = vector.broadcast %cst_36 : f32 to vector<8x128xf32>
    %473 = arith.mulf %472, %469 : vector<8x128xf32>
    %474 = arith.select %471, %469, %473 : vector<8x128xi1>, vector<8x128xf32>
    %c98 = arith.constant 98 : index
    %475 = memref.load %arg1[%c98] : memref<125xf32, #tpu.memory_space<smem>>
    %476 = vector.broadcast %475 : f32 to vector<8x128xf32>
    %477 = arith.mulf %157, %476 : vector<8x128xf32>
    %c101 = arith.constant 101 : index
    %478 = memref.load %arg1[%c101] : memref<125xf32, #tpu.memory_space<smem>>
    %479 = vector.broadcast %478 : f32 to vector<8x128xf32>
    %480 = arith.mulf %204, %479 : vector<8x128xf32>
    %481 = arith.addf %477, %480 : vector<8x128xf32>
    %c104 = arith.constant 104 : index
    %482 = memref.load %arg1[%c104] : memref<125xf32, #tpu.memory_space<smem>>
    %483 = vector.broadcast %482 : f32 to vector<8x128xf32>
    %484 = arith.mulf %251, %483 : vector<8x128xf32>
    %485 = arith.addf %481, %484 : vector<8x128xf32>
    %c107 = arith.constant 107 : index
    %486 = memref.load %arg1[%c107] : memref<125xf32, #tpu.memory_space<smem>>
    %487 = vector.broadcast %486 : f32 to vector<8x128xf32>
    %488 = arith.mulf %298, %487 : vector<8x128xf32>
    %489 = arith.addf %485, %488 : vector<8x128xf32>
    %c110 = arith.constant 110 : index
    %490 = memref.load %arg1[%c110] : memref<125xf32, #tpu.memory_space<smem>>
    %491 = vector.broadcast %490 : f32 to vector<8x128xf32>
    %492 = arith.mulf %345, %491 : vector<8x128xf32>
    %493 = arith.addf %489, %492 : vector<8x128xf32>
    %c113 = arith.constant 113 : index
    %494 = memref.load %arg1[%c113] : memref<125xf32, #tpu.memory_space<smem>>
    %495 = vector.broadcast %494 : f32 to vector<8x128xf32>
    %496 = arith.mulf %392, %495 : vector<8x128xf32>
    %497 = arith.addf %493, %496 : vector<8x128xf32>
    %c116 = arith.constant 116 : index
    %498 = memref.load %arg1[%c116] : memref<125xf32, #tpu.memory_space<smem>>
    %499 = vector.broadcast %498 : f32 to vector<8x128xf32>
    %500 = arith.mulf %439, %499 : vector<8x128xf32>
    %501 = arith.addf %497, %500 : vector<8x128xf32>
    %c119 = arith.constant 119 : index
    %502 = memref.load %arg1[%c119] : memref<125xf32, #tpu.memory_space<smem>>
    %503 = vector.broadcast %502 : f32 to vector<8x128xf32>
    %504 = arith.addf %501, %503 : vector<8x128xf32>
    %cst_37 = arith.constant 0.000000e+00 : f32
    %505 = vector.broadcast %cst_37 : f32 to vector<8x128xf32>
    %506 = arith.cmpf ogt, %504, %505 : vector<8x128xf32>
    %cst_38 = arith.constant 0.00999999977 : f32
    %507 = vector.broadcast %cst_38 : f32 to vector<8x128xf32>
    %508 = arith.mulf %507, %504 : vector<8x128xf32>
    %509 = arith.select %506, %504, %508 : vector<8x128xi1>, vector<8x128xf32>
    %c99 = arith.constant 99 : index
    %510 = memref.load %arg1[%c99] : memref<125xf32, #tpu.memory_space<smem>>
    %511 = vector.broadcast %510 : f32 to vector<8x128xf32>
    %512 = arith.mulf %157, %511 : vector<8x128xf32>
    %c102 = arith.constant 102 : index
    %513 = memref.load %arg1[%c102] : memref<125xf32, #tpu.memory_space<smem>>
    %514 = vector.broadcast %513 : f32 to vector<8x128xf32>
    %515 = arith.mulf %204, %514 : vector<8x128xf32>
    %516 = arith.addf %512, %515 : vector<8x128xf32>
    %c105 = arith.constant 105 : index
    %517 = memref.load %arg1[%c105] : memref<125xf32, #tpu.memory_space<smem>>
    %518 = vector.broadcast %517 : f32 to vector<8x128xf32>
    %519 = arith.mulf %251, %518 : vector<8x128xf32>
    %520 = arith.addf %516, %519 : vector<8x128xf32>
    %c108 = arith.constant 108 : index
    %521 = memref.load %arg1[%c108] : memref<125xf32, #tpu.memory_space<smem>>
    %522 = vector.broadcast %521 : f32 to vector<8x128xf32>
    %523 = arith.mulf %298, %522 : vector<8x128xf32>
    %524 = arith.addf %520, %523 : vector<8x128xf32>
    %c111 = arith.constant 111 : index
    %525 = memref.load %arg1[%c111] : memref<125xf32, #tpu.memory_space<smem>>
    %526 = vector.broadcast %525 : f32 to vector<8x128xf32>
    %527 = arith.mulf %345, %526 : vector<8x128xf32>
    %528 = arith.addf %524, %527 : vector<8x128xf32>
    %c114 = arith.constant 114 : index
    %529 = memref.load %arg1[%c114] : memref<125xf32, #tpu.memory_space<smem>>
    %530 = vector.broadcast %529 : f32 to vector<8x128xf32>
    %531 = arith.mulf %392, %530 : vector<8x128xf32>
    %532 = arith.addf %528, %531 : vector<8x128xf32>
    %c117 = arith.constant 117 : index
    %533 = memref.load %arg1[%c117] : memref<125xf32, #tpu.memory_space<smem>>
    %534 = vector.broadcast %533 : f32 to vector<8x128xf32>
    %535 = arith.mulf %439, %534 : vector<8x128xf32>
    %536 = arith.addf %532, %535 : vector<8x128xf32>
    %c120 = arith.constant 120 : index
    %537 = memref.load %arg1[%c120] : memref<125xf32, #tpu.memory_space<smem>>
    %538 = vector.broadcast %537 : f32 to vector<8x128xf32>
    %539 = arith.addf %536, %538 : vector<8x128xf32>
    %cst_39 = arith.constant 0.000000e+00 : f32
    %540 = vector.broadcast %cst_39 : f32 to vector<8x128xf32>
    %541 = arith.cmpf ogt, %539, %540 : vector<8x128xf32>
    %cst_40 = arith.constant 0.00999999977 : f32
    %542 = vector.broadcast %cst_40 : f32 to vector<8x128xf32>
    %543 = arith.mulf %542, %539 : vector<8x128xf32>
    %544 = arith.select %541, %539, %543 : vector<8x128xi1>, vector<8x128xf32>
    %c121 = arith.constant 121 : index
    %545 = memref.load %arg1[%c121] : memref<125xf32, #tpu.memory_space<smem>>
    %546 = vector.broadcast %545 : f32 to vector<8x128xf32>
    %547 = arith.mulf %474, %546 : vector<8x128xf32>
    %c122 = arith.constant 122 : index
    %548 = memref.load %arg1[%c122] : memref<125xf32, #tpu.memory_space<smem>>
    %549 = vector.broadcast %548 : f32 to vector<8x128xf32>
    %550 = arith.mulf %509, %549 : vector<8x128xf32>
    %551 = arith.addf %547, %550 : vector<8x128xf32>
    %c123 = arith.constant 123 : index
    %552 = memref.load %arg1[%c123] : memref<125xf32, #tpu.memory_space<smem>>
    %553 = vector.broadcast %552 : f32 to vector<8x128xf32>
    %554 = arith.mulf %544, %553 : vector<8x128xf32>
    %555 = arith.addf %551, %554 : vector<8x128xf32>
    %c124 = arith.constant 124 : index
    %556 = memref.load %arg1[%c124] : memref<125xf32, #tpu.memory_space<smem>>
    %557 = vector.broadcast %556 : f32 to vector<8x128xf32>
    %558 = arith.addf %555, %557 : vector<8x128xf32>
    %cst_41 = arith.constant 0.000000e+00 : f32
    %559 = vector.broadcast %cst_41 : f32 to vector<8x128xf32>
    %560 = arith.cmpf ogt, %558, %559 : vector<8x128xf32>
    %cst_42 = arith.constant 0.00999999977 : f32
    %561 = vector.broadcast %cst_42 : f32 to vector<8x128xf32>
    %562 = arith.mulf %561, %558 : vector<8x128xf32>
    %563 = arith.select %560, %558, %562 : vector<8x128xi1>, vector<8x128xf32>
    %c0_43 = arith.constant 0 : index
    %c0_44 = arith.constant 0 : index
    %564 = vector.load %arg3[%c0_43, %c0_44] : memref<8x128xf32, #tpu.memory_space<vmem>>, vector<8x128xf32>
    tpu.vector_store %arg3[%c0_43, %c0_44], %563 {strides = array<i32>} : memref<8x128xf32, #tpu.memory_space<vmem>>, vector<8x128xf32>,
    return
  }
  func.func @transform_0(%arg0: i32) -> i32 {
    %c0_i32 = arith.constant 0 : i32
    %c0_i32_0 = arith.constant 0 : i32
    return %c0_i32 : i32
  }
  func.func @transform_1(%arg0: i32) -> (i32, i32) {
    %c0_i32 = arith.constant 0 : i32
    %c0_i32_0 = arith.constant 0 : i32
    return %arg0, %c0_i32 : i32, i32
  }
  func.func @transform_2(%arg0: i32) -> (i32, i32) {
    %c0_i32 = arith.constant 0 : i32
    %c0_i32_0 = arith.constant 0 : i32
    return %arg0, %c0_i32 : i32, i32
  }
}

</mosaic_0001>

<llo_original>
// kernel: tpu_custom_call.1
$region0: #{tpu_custom_call.1}
  #allocation0 [shape = 'u32[]', space=smem, size = 0x4, offset = 0x4, fixed_abs, tag = 'smem constant byte address 0x4 - core index']
  #allocation1 [shape = 'u32[144,128]{1,0:T(1,128)}', space=vmem, size = 0x12000, scoped, tag = 'internal scratch']
  %s0 = inlined_call_operand.hbm [shape: f32[125], index: 0, kind: input, shape index: {}]
  %s1 = inlined_call_operand.hbm [shape: f32[8,128], index: 1, kind: input, shape index: {}]
  %s2 = inlined_call_operand.hbm [shape: f32[8,128], index: 2, kind: output, shape index: {}]
  %s3 = sld [smem:[#allocation0]]
  $region26: #{tpu_custom_call.1} parent=0
    _
  %s5 = ssub.s32 1, %s3
  %s6 = scalar_select 0, %s5, %s3
  $region1: #{tpu_custom_call.1} parent=0
    #allocation2 [shape = 'u8[512]{0}', space=smem, size = 0x200, scoped, tag = 'input window, operand 0, single buffered']
    #allocation3 [shape = 's32[1]{0}', space=sflag, size = 0x4, scoped, tag = 'scoped memory for tpu_custom_call.1']
    #allocation4 [shape = 's32[1]{0}', space=sflag, size = 0x4, scoped, tag = 'scoped memory for tpu_custom_call.1']
    #allocation5 [shape = 's32[1]{0}', space=sflag, size = 0x4, scoped, tag = 'scoped memory for tpu_custom_call.1']
    #allocation6 [shape = 'u8[4096]{0}', space=vmem, size = 0x1000, scoped, tag = 'input window, operand 1, single buffered']
    #allocation7 [shape = 'u8[4096]{0}', space=vmem, size = 0x1000, scoped, tag = 'output window, operand 0, single buffered']
    %7 = vsyncpa [#allocation5], 0
    %8 = vsyncpa [#allocation3], 0
    %9 = vsyncpa [#allocation4], 0
    // Predicated region
    $region2: #{tpu_custom_call.1} parent=1 // pred_check
      _
    $region3: #{tpu_custom_call.1} parent=1 // pred_check_branch
      %11 = sbr.rel (0) target = $region5
    $region4: #{tpu_custom_call.1} parent=1 // pred_region
      %s13 = ssub.s32 16, 16
      %14 = vsyncadd [#allocation5], %s13
      %17 = dma.hbm_to_smem %s0, 16, [#allocation2], [#allocation5]
    $region5: #{tpu_custom_call.1} parent=1 // pred_fallthru
      _
    // Predicated region
    $region6: #{tpu_custom_call.1} parent=1 // pred_check
      _
    $region7: #{tpu_custom_call.1} parent=1 // pred_check_branch
      %19 = sbr.rel (0) target = $region9
    $region8: #{tpu_custom_call.1} parent=1 // pred_region
      %s21 = ssub.s32 128, 128
      %22 = vsyncadd [#allocation3], %s21
      %s24 = sshll.u32 [#allocation6], 4
      %s25 = int_to_ptr.vmem [resolvable:$true] %s24
      %27 = dma.hbm_to_vmem [thread:$0]  %s1, 128, %s25, [#allocation3]
    $region9: #{tpu_custom_call.1} parent=1 // pred_fallthru
      _
    // Predicated region
    $region10: #{tpu_custom_call.1} parent=1 // pred_check
      _
    $region11: #{tpu_custom_call.1} parent=1 // pred_check_branch
      %29 = sbr.rel (0) target = $region13
    $region12: #{tpu_custom_call.1} parent=1 // pred_region
      %30 = dma.done [#allocation5], 16
    $region13: #{tpu_custom_call.1} parent=1 // pred_fallthru
      _
    // Predicated region
    $region14: #{tpu_custom_call.1} parent=1 // pred_check
      _
    $region15: #{tpu_custom_call.1} parent=1 // pred_check_branch
      %32 = sbr.rel (0) target = $region17
    $region16: #{tpu_custom_call.1} parent=1 // pred_region
      %33 = dma.done [#allocation3], 128
    $region17: #{tpu_custom_call.1} parent=1 // pred_fallthru
      _
    %34 = sfence
    %v35 = vld [vmem:[#allocation6] sm:$0xff]
    %s36 = sld [smem:[#allocation2]]
    %v37 = vstv %s36
    %v38 = vmul.f32 %v35, %v37
    %s39 = sld [smem:[#allocation2 + $0xa]]
    %v40 = vstv %s39
    %v41 = vadd.f32 %v38, %v40
    %vm42 = vcmp.gt.f32.partialorder %v41, 0.0
    %v43 = vmul.f32 %v41, 0.01
    %v44 = vsel %vm42, %v41, %v43
    %s45 = sld [smem:[#allocation2 + $0x1]]
    %v46 = vstv %s45
    %v47 = vmul.f32 %v35, %v46
    %s48 = sld [smem:[#allocation2 + $0xb]]
    %v49 = vstv %s48
    %v50 = vadd.f32 %v47, %v49
    %vm51 = vcmp.gt.f32.partialorder %v50, 0.0
    %v52 = vmul.f32 %v50, 0.01
    %v53 = vsel %vm51, %v50, %v52
    %s54 = sld [smem:[#allocation2 + $0x2]]
    %v55 = vstv %s54
    %v56 = vmul.f32 %v35, %v55
    %s57 = sld [smem:[#allocation2 + $0xc]]
    %v58 = vstv %s57
    %v59 = vadd.f32 %v56, %v58
    %vm60 = vcmp.gt.f32.partialorder %v59, 0.0
    %v61 = vmul.f32 %v59, 0.01
    %v62 = vsel %vm60, %v59, %v61
    %s63 = sld [smem:[#allocation2 + $0x3]]
    %v64 = vstv %s63
    %v65 = vmul.f32 %v35, %v64
    %s66 = sld [smem:[#allocation2 + $0xd]]
    %v67 = vstv %s66
    %v68 = vadd.f32 %v65, %v67
    %vm69 = vcmp.gt.f32.partialorder %v68, 0.0
    %v70 = vmul.f32 %v68, 0.01
    %v71 = vsel %vm69, %v68, %v70
    %s72 = sld [smem:[#allocation2 + $0x4]]
    %v73 = vstv %s72
    %v74 = vmul.f32 %v35, %v73
    %s75 = sld [smem:[#allocation2 + $0xe]]
    %v76 = vstv %s75
    %v77 = vadd.f32 %v74, %v76
    %vm78 = vcmp.gt.f32.partialorder %v77, 0.0
    %v79 = vmul.f32 %v77, 0.01
    %v80 = vsel %vm78, %v77, %v79
    %s81 = sld [smem:[#allocation2 + $0x5]]
    %v82 = vstv %s81
    %v83 = vmul.f32 %v35, %v82
    %s84 = sld [smem:[#allocation2 + $0xf]]
    %v85 = vstv %s84
    %v86 = vadd.f32 %v83, %v85
    %vm87 = vcmp.gt.f32.partialorder %v86, 0.0
    %v88 = vmul.f32 %v86, 0.01
    %v89 = vsel %vm87, %v86, %v88
    %s90 = sld [smem:[#allocation2 + $0x6]]
    %v91 = vstv %s90
    %v92 = vmul.f32 %v35, %v91
    %s93 = sld [smem:[#allocation2 + $0x10]]
    %v94 = vstv %s93
    %v95 = vadd.f32 %v92, %v94
    %vm96 = vcmp.gt.f32.partialorder %v95, 0.0
    %v97 = vmul.f32 %v95, 0.01
    %v98 = vsel %vm96, %v95, %v97
    %s99 = sld [smem:[#allocation2 + $0x7]]
    %v100 = vstv %s99
    %v101 = vmul.f32 %v35, %v100
    %s102 = sld [smem:[#allocation2 + $0x11]]
    %v103 = vstv %s102
    %v104 = vadd.f32 %v101, %v103
    %vm105 = vcmp.gt.f32.partialorder %v104, 0.0
    %v106 = vmul.f32 %v104, 0.01
    %v107 = vsel %vm105, %v104, %v106
    %s108 = sld [smem:[#allocation2 + $0x8]]
    %v109 = vstv %s108
    %v110 = vmul.f32 %v35, %v109
    %s111 = sld [smem:[#allocation2 + $0x12]]
    %v112 = vstv %s111
    %v113 = vadd.f32 %v110, %v112
    %vm114 = vcmp.gt.f32.partialorder %v113, 0.0
    %v115 = vmul.f32 %v113, 0.01
    %v116 = vsel %vm114, %v113, %v115
    %s117 = sld [smem:[#allocation2 + $0x9]]
    %v118 = vstv %s117
    %v119 = vmul.f32 %v35, %v118
    %s120 = sld [smem:[#allocation2 + $0x13]]
    %v121 = vstv %s120
    %v122 = vadd.f32 %v119, %v121
    %vm123 = vcmp.gt.f32.partialorder %v122, 0.0
    %v124 = vmul.f32 %v122, 0.01
    %v125 = vsel %vm123, %v122, %v124
    %s126 = sld [smem:[#allocation2 + $0x14]]
    %v127 = vstv %s126
    %v128 = vmul.f32 %v44, %v127
    %s129 = sld [smem:[#allocation2 + $0x1b]]
    %v130 = vstv %s129
    %v131 = vmul.f32 %v53, %v130
    %v132 = vadd.f32 %v128, %v131
    %s133 = sld [smem:[#allocation2 + $0x22]]
    %v134 = vstv %s133
    %v135 = vmul.f32 %v62, %v134
    %v136 = vadd.f32 %v132, %v135
    %s137 = sld [smem:[#allocation2 + $0x29]]
    %v138 = vstv %s137
    %v139 = vmul.f32 %v71, %v138
    %v140 = vadd.f32 %v136, %v139
    %s141 = sld [smem:[#allocation2 + $0x30]]
    %v142 = vstv %s141
    %v143 = vmul.f32 %v80, %v142
    %v144 = vadd.f32 %v140, %v143
    %s145 = sld [smem:[#allocation2 + $0x37]]
    %v146 = vstv %s145
    %v147 = vmul.f32 %v89, %v146
    %v148 = vadd.f32 %v144, %v147
    %s149 = sld [smem:[#allocation2 + $0x3e]]
    %v150 = vstv %s149
    %v151 = vmul.f32 %v98, %v150
    %v152 = vadd.f32 %v148, %v151
    %s153 = sld [smem:[#allocation2 + $0x45]]
    %v154 = vstv %s153
    %v155 = vmul.f32 %v107, %v154
    %v156 = vadd.f32 %v152, %v155
    %s157 = sld [smem:[#allocation2 + $0x4c]]
    %v158 = vstv %s157
    %v159 = vmul.f32 %v116, %v158
    %v160 = vadd.f32 %v156, %v159
    %s161 = sld [smem:[#allocation2 + $0x53]]
    %v162 = vstv %s161
    %v163 = vmul.f32 %v125, %v162
    %v164 = vadd.f32 %v160, %v163
    %s165 = sld [smem:[#allocation2 + $0x5a]]
    %v166 = vstv %s165
    %v167 = vadd.f32 %v164, %v166
    %vm168 = vcmp.gt.f32.partialorder %v167, 0.0
    %v169 = vmul.f32 %v167, 0.01
    %v170 = vsel %vm168, %v167, %v169
    %s171 = sld [smem:[#allocation2 + $0x15]]
    %v172 = vstv %s171
    %v173 = vmul.f32 %v44, %v172
    %s174 = sld [smem:[#allocation2 + $0x1c]]
    %v175 = vstv %s174
    %v176 = vmul.f32 %v53, %v175
    %v177 = vadd.f32 %v173, %v176
    %s178 = sld [smem:[#allocation2 + $0x23]]
    %v179 = vstv %s178
    %v180 = vmul.f32 %v62, %v179
    %v181 = vadd.f32 %v177, %v180
    %s182 = sld [smem:[#allocation2 + $0x2a]]
    %v183 = vstv %s182
    %v184 = vmul.f32 %v71, %v183
    %v185 = vadd.f32 %v181, %v184
    %s186 = sld [smem:[#allocation2 + $0x31]]
    %v187 = vstv %s186
    %v188 = vmul.f32 %v80, %v187
    %v189 = vadd.f32 %v185, %v188
    %s190 = sld [smem:[#allocation2 + $0x38]]
    %v191 = vstv %s190
    %v192 = vmul.f32 %v89, %v191
    %v193 = vadd.f32 %v189, %v192
    %s194 = sld [smem:[#allocation2 + $0x3f]]
    %v195 = vstv %s194
    %v196 = vmul.f32 %v98, %v195
    %v197 = vadd.f32 %v193, %v196
    %s198 = sld [smem:[#allocation2 + $0x46]]
    %v199 = vstv %s198
    %v200 = vmul.f32 %v107, %v199
    %v201 = vadd.f32 %v197, %v200
    %s202 = sld [smem:[#allocation2 + $0x4d]]
    %v203 = vstv %s202
    %v204 = vmul.f32 %v116, %v203
    %v205 = vadd.f32 %v201, %v204
    %s206 = sld [smem:[#allocation2 + $0x54]]
    %v207 = vstv %s206
    %v208 = vmul.f32 %v125, %v207
    %v209 = vadd.f32 %v205, %v208
    %s210 = sld [smem:[#allocation2 + $0x5b]]
    %v211 = vstv %s210
    %v212 = vadd.f32 %v209, %v211
    %vm213 = vcmp.gt.f32.partialorder %v212, 0.0
    %v214 = vmul.f32 %v212, 0.01
    %v215 = vsel %vm213, %v212, %v214
    %s216 = sld [smem:[#allocation2 + $0x16]]
    %v217 = vstv %s216
    %v218 = vmul.f32 %v44, %v217
    %s219 = sld [smem:[#allocation2 + $0x1d]]
    %v220 = vstv %s219
    %v221 = vmul.f32 %v53, %v220
    %v222 = vadd.f32 %v218, %v221
    %s223 = sld [smem:[#allocation2 + $0x24]]
    %v224 = vstv %s223
    %v225 = vmul.f32 %v62, %v224
    %v226 = vadd.f32 %v222, %v225
    %s227 = sld [smem:[#allocation2 + $0x2b]]
    %v228 = vstv %s227
    %v229 = vmul.f32 %v71, %v228
    %v230 = vadd.f32 %v226, %v229
    %s231 = sld [smem:[#allocation2 + $0x32]]
    %v232 = vstv %s231
    %v233 = vmul.f32 %v80, %v232
    %v234 = vadd.f32 %v230, %v233
    %s235 = sld [smem:[#allocation2 + $0x39]]
    %v236 = vstv %s235
    %v237 = vmul.f32 %v89, %v236
    %v238 = vadd.f32 %v234, %v237
    %s239 = sld [smem:[#allocation2 + $0x40]]
    %v240 = vstv %s239
    %v241 = vmul.f32 %v98, %v240
    %v242 = vadd.f32 %v238, %v241
    %s243 = sld [smem:[#allocation2 + $0x47]]
    %v244 = vstv %s243
    %v245 = vmul.f32 %v107, %v244
    %v246 = vadd.f32 %v242, %v245
    %s247 = sld [smem:[#allocation2 + $0x4e]]
    %v248 = vstv %s247
    %v249 = vmul.f32 %v116, %v248
    %v250 = vadd.f32 %v246, %v249
    %s251 = sld [smem:[#allocation2 + $0x55]]
    %v252 = vstv %s251
    %v253 = vmul.f32 %v125, %v252
    %v254 = vadd.f32 %v250, %v253
    %s255 = sld [smem:[#allocation2 + $0x5c]]
    %v256 = vstv %s255
    %v257 = vadd.f32 %v254, %v256
    %vm258 = vcmp.gt.f32.partialorder %v257, 0.0
    %v259 = vmul.f32 %v257, 0.01
    %v260 = vsel %vm258, %v257, %v259
    %s261 = sld [smem:[#allocation2 + $0x17]]
    %v262 = vstv %s261
    %v263 = vmul.f32 %v44, %v262
    %s264 = sld [smem:[#allocation2 + $0x1e]]
    %v265 = vstv %s264
    %v266 = vmul.f32 %v53, %v265
    %v267 = vadd.f32 %v263, %v266
    %s268 = sld [smem:[#allocation2 + $0x25]]
    %v269 = vstv %s268
    %v270 = vmul.f32 %v62, %v269
    %v271 = vadd.f32 %v267, %v270
    %s272 = sld [smem:[#allocation2 + $0x2c]]
    %v273 = vstv %s272
    %v274 = vmul.f32 %v71, %v273
    %v275 = vadd.f32 %v271, %v274
    %s276 = sld [smem:[#allocation2 + $0x33]]
    %v277 = vstv %s276
    %v278 = vmul.f32 %v80, %v277
    %v279 = vadd.f32 %v275, %v278
    %s280 = sld [smem:[#allocation2 + $0x3a]]
    %v281 = vstv %s280
    %v282 = vmul.f32 %v89, %v281
    %v283 = vadd.f32 %v279, %v282
    %s284 = sld [smem:[#allocation2 + $0x41]]
    %v285 = vstv %s284
    %v286 = vmul.f32 %v98, %v285
    %v287 = vadd.f32 %v283, %v286
    %s288 = sld [smem:[#allocation2 + $0x48]]
    %v289 = vstv %s288
    %v290 = vmul.f32 %v107, %v289
    %v291 = vadd.f32 %v287, %v290
    %s292 = sld [smem:[#allocation2 + $0x4f]]
    %v293 = vstv %s292
    %v294 = vmul.f32 %v116, %v293
    %v295 = vadd.f32 %v291, %v294
    %s296 = sld [smem:[#allocation2 + $0x56]]
    %v297 = vstv %s296
    %v298 = vmul.f32 %v125, %v297
    %v299 = vadd.f32 %v295, %v298
    %s300 = sld [smem:[#allocation2 + $0x5d]]
    %v301 = vstv %s300
    %v302 = vadd.f32 %v299, %v301
    %vm303 = vcmp.gt.f32.partialorder %v302, 0.0
    %v304 = vmul.f32 %v302, 0.01
    %v305 = vsel %vm303, %v302, %v304
    %s306 = sld [smem:[#allocation2 + $0x18]]
    %v307 = vstv %s306
    %v308 = vmul.f32 %v44, %v307
    %s309 = sld [smem:[#allocation2 + $0x1f]]
    %v310 = vstv %s309
    %v311 = vmul.f32 %v53, %v310
    %v312 = vadd.f32 %v308, %v311
    %s313 = sld [smem:[#allocation2 + $0x26]]
    %v314 = vstv %s313
    %v315 = vmul.f32 %v62, %v314
    %v316 = vadd.f32 %v312, %v315
    %s317 = sld [smem:[#allocation2 + $0x2d]]
    %v318 = vstv %s317
    %v319 = vmul.f32 %v71, %v318
    %v320 = vadd.f32 %v316, %v319
    %s321 = sld [smem:[#allocation2 + $0x34]]
    %v322 = vstv %s321
    %v323 = vmul.f32 %v80, %v322
    %v324 = vadd.f32 %v320, %v323
    %s325 = sld [smem:[#allocation2 + $0x3b]]
    %v326 = vstv %s325
    %v327 = vmul.f32 %v89, %v326
    %v328 = vadd.f32 %v324, %v327
    %s329 = sld [smem:[#allocation2 + $0x42]]
    %v330 = vstv %s329
    %v331 = vmul.f32 %v98, %v330
    %v332 = vadd.f32 %v328, %v331
    %s333 = sld [smem:[#allocation2 + $0x49]]
    %v334 = vstv %s333
    %v335 = vmul.f32 %v107, %v334
    %v336 = vadd.f32 %v332, %v335
    %s337 = sld [smem:[#allocation2 + $0x50]]
    %v338 = vstv %s337
    %v339 = vmul.f32 %v116, %v338
    %v340 = vadd.f32 %v336, %v339
    %s341 = sld [smem:[#allocation2 + $0x57]]
    %v342 = vstv %s341
    %v343 = vmul.f32 %v125, %v342
    %v344 = vadd.f32 %v340, %v343
    %s345 = sld [smem:[#allocation2 + $0x5e]]
    %v346 = vstv %s345
    %v347 = vadd.f32 %v344, %v346
    %vm348 = vcmp.gt.f32.partialorder %v347, 0.0
    %v349 = vmul.f32 %v347, 0.01
    %v350 = vsel %vm348, %v347, %v349
    %s351 = sld [smem:[#allocation2 + $0x19]]
    %v352 = vstv %s351
    %v353 = vmul.f32 %v44, %v352
    %s354 = sld [smem:[#allocation2 + $0x20]]
    %v355 = vstv %s354
    %v356 = vmul.f32 %v53, %v355
    %v357 = vadd.f32 %v353, %v356
    %s358 = sld [smem:[#allocation2 + $0x27]]
    %v359 = vstv %s358
    %v360 = vmul.f32 %v62, %v359
    %v361 = vadd.f32 %v357, %v360
    %s362 = sld [smem:[#allocation2 + $0x2e]]
    %v363 = vstv %s362
    %v364 = vmul.f32 %v71, %v363
    %v365 = vadd.f32 %v361, %v364
    %s366 = sld [smem:[#allocation2 + $0x35]]
    %v367 = vstv %s366
    %v368 = vmul.f32 %v80, %v367
    %v369 = vadd.f32 %v365, %v368
    %s370 = sld [smem:[#allocation2 + $0x3c]]
    %v371 = vstv %s370
    %v372 = vmul.f32 %v89, %v371
    %v373 = vadd.f32 %v369, %v372
    %s374 = sld [smem:[#allocation2 + $0x43]]
    %v375 = vstv %s374
    %v376 = vmul.f32 %v98, %v375
    %v377 = vadd.f32 %v373, %v376
    %s378 = sld [smem:[#allocation2 + $0x4a]]
    %v379 = vstv %s378
    %v380 = vmul.f32 %v107, %v379
    %v381 = vadd.f32 %v377, %v380
    %s382 = sld [smem:[#allocation2 + $0x51]]
    %v383 = vstv %s382
    %v384 = vmul.f32 %v116, %v383
    %v385 = vadd.f32 %v381, %v384
    %s386 = sld [smem:[#allocation2 + $0x58]]
    %v387 = vstv %s386
    %v388 = vmul.f32 %v125, %v387
    %v389 = vadd.f32 %v385, %v388
    %s390 = sld [smem:[#allocation2 + $0x5f]]
    %v391 = vstv %s390
    %v392 = vadd.f32 %v389, %v391
    %vm393 = vcmp.gt.f32.partialorder %v392, 0.0
    %v394 = vmul.f32 %v392, 0.01
    %v395 = vsel %vm393, %v392, %v394
    %s396 = sld [smem:[#allocation2 + $0x1a]]
    %v397 = vstv %s396
    %v398 = vmul.f32 %v44, %v397
    %s399 = sld [smem:[#allocation2 + $0x21]]
    %v400 = vstv %s399
    %v401 = vmul.f32 %v53, %v400
    %v402 = vadd.f32 %v398, %v401
    %s403 = sld [smem:[#allocation2 + $0x28]]
    %v404 = vstv %s403
    %v405 = vmul.f32 %v62, %v404
    %v406 = vadd.f32 %v402, %v405
    %s407 = sld [smem:[#allocation2 + $0x2f]]
    %v408 = vstv %s407
    %v409 = vmul.f32 %v71, %v408
    %v410 = vadd.f32 %v406, %v409
    %s411 = sld [smem:[#allocation2 + $0x36]]
    %v412 = vstv %s411
    %v413 = vmul.f32 %v80, %v412
    %v414 = vadd.f32 %v410, %v413
    %s415 = sld [smem:[#allocation2 + $0x3d]]
    %v416 = vstv %s415
    %v417 = vmul.f32 %v89, %v416
    %v418 = vadd.f32 %v414, %v417
    %s419 = sld [smem:[#allocation2 + $0x44]]
    %v420 = vstv %s419
    %v421 = vmul.f32 %v98, %v420
    %v422 = vadd.f32 %v418, %v421
    %s423 = sld [smem:[#allocation2 + $0x4b]]
    %v424 = vstv %s423
    %v425 = vmul.f32 %v107, %v424
    %v426 = vadd.f32 %v422, %v425
    %s427 = sld [smem:[#allocation2 + $0x52]]
    %v428 = vstv %s427
    %v429 = vmul.f32 %v116, %v428
    %v430 = vadd.f32 %v426, %v429
    %s431 = sld [smem:[#allocation2 + $0x59]]
    %v432 = vstv %s431
    %v433 = vmul.f32 %v125, %v432
    %v434 = vadd.f32 %v430, %v433
    %s435 = sld [smem:[#allocation2 + $0x60]]
    %v436 = vstv %s435
    %v437 = vadd.f32 %v434, %v436
    %vm438 = vcmp.gt.f32.partialorder %v437, 0.0
    %v439 = vmul.f32 %v437, 0.01
    %v440 = vsel %vm438, %v437, %v439
    %s441 = sld [smem:[#allocation2 + $0x61]]
    %v442 = vstv %s441
    %v443 = vmul.f32 %v170, %v442
    %s444 = sld [smem:[#allocation2 + $0x64]]
    %v445 = vstv %s444
    %v446 = vmul.f32 %v215, %v445
    %v447 = vadd.f32 %v443, %v446
    %s448 = sld [smem:[#allocation2 + $0x67]]
    %v449 = vstv %s448
    %v450 = vmul.f32 %v260, %v449
    %v451 = vadd.f32 %v447, %v450
    %s452 = sld [smem:[#allocation2 + $0x6a]]
    %v453 = vstv %s452
    %v454 = vmul.f32 %v305, %v453
    %v455 = vadd.f32 %v451, %v454
    %s456 = sld [smem:[#allocation2 + $0x6d]]
    %v457 = vstv %s456
    %v458 = vmul.f32 %v350, %v457
    %v459 = vadd.f32 %v455, %v458
    %s460 = sld [smem:[#allocation2 + $0x70]]
    %v461 = vstv %s460
    %v462 = vmul.f32 %v395, %v461
    %v463 = vadd.f32 %v459, %v462
    %s464 = sld [smem:[#allocation2 + $0x73]]
    %v465 = vstv %s464
    %v466 = vmul.f32 %v440, %v465
    %v467 = vadd.f32 %v463, %v466
    %s468 = sld [smem:[#allocation2 + $0x76]]
    %v469 = vstv %s468
    %v470 = vadd.f32 %v467, %v469
    %vm471 = vcmp.gt.f32.partialorder %v470, 0.0
    %v472 = vmul.f32 %v470, 0.01
    %v473 = vsel %vm471, %v470, %v472
    %s474 = sld [smem:[#allocation2 + $0x62]]
    %v475 = vstv %s474
    %v476 = vmul.f32 %v170, %v475
    %s477 = sld [smem:[#allocation2 + $0x65]]
    %v478 = vstv %s477
    %v479 = vmul.f32 %v215, %v478
    %v480 = vadd.f32 %v476, %v479
    %s481 = sld [smem:[#allocation2 + $0x68]]
    %v482 = vstv %s481
    %v483 = vmul.f32 %v260, %v482
    %v484 = vadd.f32 %v480, %v483
    %s485 = sld [smem:[#allocation2 + $0x6b]]
    %v486 = vstv %s485
    %v487 = vmul.f32 %v305, %v486
    %v488 = vadd.f32 %v484, %v487
    %s489 = sld [smem:[#allocation2 + $0x6e]]
    %v490 = vstv %s489
    %v491 = vmul.f32 %v350, %v490
    %v492 = vadd.f32 %v488, %v491
    %s493 = sld [smem:[#allocation2 + $0x71]]
    %v494 = vstv %s493
    %v495 = vmul.f32 %v395, %v494
    %v496 = vadd.f32 %v492, %v495
    %s497 = sld [smem:[#allocation2 + $0x74]]
    %v498 = vstv %s497
    %v499 = vmul.f32 %v440, %v498
    %v500 = vadd.f32 %v496, %v499
    %s501 = sld [smem:[#allocation2 + $0x77]]
    %v502 = vstv %s501
    %v503 = vadd.f32 %v500, %v502
    %vm504 = vcmp.gt.f32.partialorder %v503, 0.0
    %v505 = vmul.f32 %v503, 0.01
    %v506 = vsel %vm504, %v503, %v505
    %s507 = sld [smem:[#allocation2 + $0x63]]
    %v508 = vstv %s507
    %v509 = vmul.f32 %v170, %v508
    %s510 = sld [smem:[#allocation2 + $0x66]]
    %v511 = vstv %s510
    %v512 = vmul.f32 %v215, %v511
    %v513 = vadd.f32 %v509, %v512
    %s514 = sld [smem:[#allocation2 + $0x69]]
    %v515 = vstv %s514
    %v516 = vmul.f32 %v260, %v515
    %v517 = vadd.f32 %v513, %v516
    %s518 = sld [smem:[#allocation2 + $0x6c]]
    %v519 = vstv %s518
    %v520 = vmul.f32 %v305, %v519
    %v521 = vadd.f32 %v517, %v520
    %s522 = sld [smem:[#allocation2 + $0x6f]]
    %v523 = vstv %s522
    %v524 = vmul.f32 %v350, %v523
    %v525 = vadd.f32 %v521, %v524
    %s526 = sld [smem:[#allocation2 + $0x72]]
    %v527 = vstv %s526
    %v528 = vmul.f32 %v395, %v527
    %v529 = vadd.f32 %v525, %v528
    %s530 = sld [smem:[#allocation2 + $0x75]]
    %v531 = vstv %s530
    %v532 = vmul.f32 %v440, %v531
    %v533 = vadd.f32 %v529, %v532
    %s534 = sld [smem:[#allocation2 + $0x78]]
    %v535 = vstv %s534
    %v536 = vadd.f32 %v533, %v535
    %vm537 = vcmp.gt.f32.partialorder %v536, 0.0
    %v538 = vmul.f32 %v536, 0.01
    %v539 = vsel %vm537, %v536, %v538
    %s540 = sld [smem:[#allocation2 + $0x79]]
    %v541 = vstv %s540
    %v542 = vmul.f32 %v473, %v541
    %s543 = sld [smem:[#allocation2 + $0x7a]]
    %v544 = vstv %s543
    %v545 = vmul.f32 %v506, %v544
    %v546 = vadd.f32 %v542, %v545
    %s547 = sld [smem:[#allocation2 + $0x7b]]
    %v548 = vstv %s547
    %v549 = vmul.f32 %v539, %v548
    %v550 = vadd.f32 %v546, %v549
    %s551 = sld [smem:[#allocation2 + $0x7c]]
    %v552 = vstv %s551
    %v553 = vadd.f32 %v550, %v552
    %vm554 = vcmp.gt.f32.partialorder %v553, 0.0
    %v555 = vmul.f32 %v553, 0.01
    %v556 = vsel %vm554, %v553, %v555
    %557 = vst [vmem:[#allocation7] sm:$0xff] %v556
    // Predicated region
    $region18: #{tpu_custom_call.1} parent=1 // pred_check
      _
    $region19: #{tpu_custom_call.1} parent=1 // pred_check_branch
      %559 = sbr.rel (0) target = $region21
    $region20: #{tpu_custom_call.1} parent=1 // pred_region
      %s561 = ssub.s32 128, 128
      %562 = vsyncadd [#allocation4], %s561
      %s564 = sshll.u32 [#allocation7], 4
      %s565 = int_to_ptr.vmem [resolvable:$true] %s564
      %567 = dma.vmem_to_hbm [thread:$0]  %s565, 128, %s2, [#allocation4]
    $region21: #{tpu_custom_call.1} parent=1 // pred_fallthru
      _
    // Predicated region
    $region22: #{tpu_custom_call.1} parent=1 // pred_check
      _
    $region23: #{tpu_custom_call.1} parent=1 // pred_check_branch
      %569 = sbr.rel (0) target = $region25
    $region24: #{tpu_custom_call.1} parent=1 // pred_region
      %570 = dma.done [#allocation4], 128
    $region25: #{tpu_custom_call.1} parent=1 // pred_fallthru
      _
    %571 = vsyncpa [#allocation3], 1
    %572 = vsyncpa [#allocation4], 1
    %573 = vsyncpa [#allocation5], 1

</llo_original>
